<compile_context>
chip_gen: v7x
topology: tpu7x:2x2x1
jax: 0.10.0
libtpu: 0.0.40
codegen_flags: <defaults>
</compile_context>

<pallas_src>
import functools

import jax
import jax.numpy as jnp
import numpy as np
from jax import lax
from jax.experimental import pallas as pl
from jax.experimental.pallas import tpu as pltpu

_LANE = 128
_SUB = 8
_TILE = _SUB * _LANE        # pad granularity so rows % 8 == 0
_MAX_BLK_ROWS = 2048        # 2048*128*4B = 1 MiB per input tile
_SMOOTH = 1e-5


def _dice_partial_kernel(logit_ref, target_ref, out_ref, *, total_n, blk_rows,
                         need_mask):
    """Per-block partial sums: out_ref[0,:] = [sum(p*t), sum(p), sum(t)]."""
    x = logit_ref[...].astype(jnp.float32)
    t = target_ref[...].astype(jnp.float32)

    # Double sigmoid, exactly as in the PyTorch forward (reassignment kept).
    p = jax.nn.sigmoid(jax.nn.sigmoid(x))

    if need_mask:
        # Mask out wrapper padding and the (possibly) out-of-bounds tail block.
        # Applied AFTER the sigmoid so any unspecified tail data (even NaN/Inf)
        # is discarded by the select.
        i = pl.program_id(0)
        row_ids = lax.broadcasted_iota(jnp.int32, (blk_rows, _LANE), 0)
        lane_ids = lax.broadcasted_iota(jnp.int32, (blk_rows, _LANE), 1)
        local_idx = row_ids * _LANE + lane_ids
        limit = total_n - i * (blk_rows * _LANE)   # valid elems in this block
        valid = local_idx < limit
        p = jnp.where(valid, p, 0.0)
        t = jnp.where(valid, t, 0.0)

    it = p * t

    def _fold(v):
        # (blk_rows,128) -> (blk_rows//8, 8, 128) is a leading-dim split
        # (layout preserving); the axis-0 sum is pure VPU adds. The final
        # cross-lane reduce runs once per block on a single (8,128) tile.
        return jnp.sum(jnp.sum(v.reshape(-1, _SUB, _LANE), axis=0))

    out_ref[0, 0] = _fold(it)
    out_ref[0, 1] = _fold(p)
    out_ref[0, 2] = _fold(t)


@jax.jit
def soft_custom_dice_loss(logits, targets):
    """Pallas TPU implementation of SoftCustomDiceLoss.forward."""
    n = int(logits.size)
    flat_l = logits.reshape(-1)
    flat_t = targets.reshape(-1)

    # Pad only when needed so the flat array reshapes to (rows, 128) with
    # rows % 8 == 0. For sizes that are multiples of 1024 this is a no-op.
    pad = (-n) % _TILE
    if pad:
        flat_l = jnp.pad(flat_l, (0, pad))
        flat_t = jnp.pad(flat_t, (0, pad))
    rows = (n + pad) // _LANE

    l2 = flat_l.reshape(rows, _LANE)
    t2 = flat_t.reshape(rows, _LANE)

    blk_rows = min(_MAX_BLK_ROWS, rows)          # both multiples of 8
    num_blocks = -(-rows // blk_rows)
    need_mask = (pad != 0) or (rows % blk_rows != 0)

    kernel = functools.partial(_dice_partial_kernel, total_n=n,
                               blk_rows=blk_rows, need_mask=need_mask)

    bytes_accessed = int(l2.size * l2.dtype.itemsize
                         + t2.size * t2.dtype.itemsize + num_blocks * 3 * 4)

    partials = pl.pallas_call(
        kernel,
        out_shape=jax.ShapeDtypeStruct((num_blocks, 3), jnp.float32),
        grid=(num_blocks,),
        in_specs=[
            pl.BlockSpec((blk_rows, _LANE), lambda i: (i, 0)),
            pl.BlockSpec((blk_rows, _LANE), lambda i: (i, 0)),
        ],
        out_specs=pl.BlockSpec((1, 3), lambda i: (i, 0),
                               memory_space=pltpu.MemorySpace.SMEM),
        compiler_params=pltpu.CompilerParams(
            dimension_semantics=("parallel",)),
        cost_estimate=pl.CostEstimate(flops=8 * n, transcendentals=4 * n,
                                      bytes_accessed=bytes_accessed),
    )(l2, t2)

    # Tiny final combine + dice formula (num_blocks x 3 values).
    sums = jnp.sum(partials, axis=0)
    inter, psum, tsum = sums[0], sums[1], sums[2]
    return 1.0 - 2.0 * ((2.0 * inter + _SMOOTH) / (psum + tsum + _SMOOTH))


def _reference(logits, targets):
    """Plain-JAX reference mirroring the PyTorch forward exactly."""
    p = jax.nn.sigmoid(jax.nn.sigmoid(logits.astype(jnp.float32)))
    iflat = p.reshape(-1)
    tflat = targets.astype(jnp.float32).reshape(-1)
    inter = jnp.sum(iflat * tflat)
    return 1.0 - 2.0 * ((2.0 * inter + _SMOOTH) /
                        (jnp.sum(iflat) + jnp.sum(tflat) + _SMOOTH))


def _check(shape, key):
    k1, k2 = jax.random.split(key)
    logits = jax.random.normal(k1, shape, dtype=jnp.float32)
    targets = (jax.random.uniform(k2, shape) > 0.5).astype(jnp.float32)
    loss = soft_custom_dice_loss(logits, targets)
    jax.block_until_ready(loss)
    ref = _reference(logits, targets)
    np.testing.assert_allclose(np.asarray(loss), np.asarray(ref),
                               rtol=1e-5, atol=1e-5)
    return loss


if __name__ == "__main__":
    key = jax.random.PRNGKey(0)
    keys = jax.random.split(key, 3)

    # Main case: NCHW logits / binary targets, as the module is used.
    _check((2, 4, 16, 16), keys[0])
    # Ragged size -> exercises the wrapper pad + in-kernel tail mask.
    _check((2, 3, 17, 19), keys[1])
    # Multi-block ragged size -> exercises the out-of-bounds tail block mask.
    _check((1, 4, 300, 307), keys[2])

    print("KERNEL_OK")
</pallas_src>

<mosaic_0001>
module attributes {stable_mosaic.version = 11 : i64} {
  func.func @_dice_partial_kernel(%arg0: i32, %arg1: memref<16x128xf32, #tpu.memory_space<vmem>>, %arg2: memref<16x128xf32, #tpu.memory_space<vmem>>, %arg3: memref<1x3xf32, #tpu.memory_space<smem>>) attributes {dimension_semantics = [#tpu.dimension_semantics<parallel>], iteration_bounds = array<i64: 1>, scalar_prefetch = 0 : i64, scratch_operands = 0 : i64, tpu.core_type = #tpu.core_type<tc>, window_params = [{transform_indices = @transform_0, window_bounds = array<i64: 16, 128>}, {transform_indices = @transform_1, window_bounds = array<i64: 16, 128>}, {transform_indices = @transform_2, window_bounds = array<i64: 1, 3>}]} {
    %c0 = arith.constant 0 : index
    %c0_0 = arith.constant 0 : index
    %0 = vector.load %arg1[%c0, %c0_0] : memref<16x128xf32, #tpu.memory_space<vmem>>, vector<16x128xf32>
    %c0_1 = arith.constant 0 : index
    %c0_2 = arith.constant 0 : index
    %1 = vector.load %arg2[%c0_1, %c0_2] : memref<16x128xf32, #tpu.memory_space<vmem>>, vector<16x128xf32>
    %2 = arith.negf %0 : vector<16x128xf32>
    %3 = math.exp %2 : vector<16x128xf32>
    %cst = arith.constant 1.000000e+00 : f32
    %4 = vector.broadcast %cst : f32 to vector<16x128xf32>
    %5 = arith.addf %4, %3 : vector<16x128xf32>
    %6 = arith.divf %4, %5 : vector<16x128xf32>
    %7 = arith.negf %6 : vector<16x128xf32>
    %8 = math.exp %7 : vector<16x128xf32>
    %cst_3 = arith.constant 1.000000e+00 : f32
    %9 = vector.broadcast %cst_3 : f32 to vector<16x128xf32>
    %10 = arith.addf %9, %8 : vector<16x128xf32>
    %11 = arith.divf %9, %10 : vector<16x128xf32>
    %12 = arith.mulf %11, %1 : vector<16x128xf32>
    %13 = vector.shape_cast %12 : vector<16x128xf32> to vector<2x8x128xf32>
    %cst_4 = arith.constant dense<0.000000e+00> : vector<8x128xf32>
    %14 = vector.multi_reduction <add>, %13, %cst_4 [0] : vector<2x8x128xf32> to vector<8x128xf32>
    %15 = vector.shape_cast %14 : vector<8x128xf32> to vector<1x8x128xf32>
    %cst_5 = arith.constant dense<0.000000e+00> : vector<1xf32>
    %16 = vector.multi_reduction <add>, %15, %cst_5 [1, 2] : vector<1x8x128xf32> to vector<1xf32>
    %17 = vector.shape_cast %16 : vector<1xf32> to vector<1x1x1xf32>
    %18 = vector.extract %17[0, 0, 0] : f32 from vector<1x1x1xf32>
    %c0_6 = arith.constant 0 : index
    %c0_7 = arith.constant 0 : index
    %19 = memref.load %arg3[%c0_6, %c0_7] : memref<1x3xf32, #tpu.memory_space<smem>>
    memref.store %18, %arg3[%c0_6, %c0_7] : memref<1x3xf32, #tpu.memory_space<smem>>
    %20 = vector.shape_cast %11 : vector<16x128xf32> to vector<2x8x128xf32>
    %cst_8 = arith.constant dense<0.000000e+00> : vector<8x128xf32>
    %21 = vector.multi_reduction <add>, %20, %cst_8 [0] : vector<2x8x128xf32> to vector<8x128xf32>
    %22 = vector.shape_cast %21 : vector<8x128xf32> to vector<1x8x128xf32>
    %cst_9 = arith.constant dense<0.000000e+00> : vector<1xf32>
    %23 = vector.multi_reduction <add>, %22, %cst_9 [1, 2] : vector<1x8x128xf32> to vector<1xf32>
    %24 = vector.shape_cast %23 : vector<1xf32> to vector<1x1x1xf32>
    %25 = vector.extract %24[0, 0, 0] : f32 from vector<1x1x1xf32>
    %c0_10 = arith.constant 0 : index
    %c1 = arith.constant 1 : index
    %26 = memref.load %arg3[%c0_10, %c1] : memref<1x3xf32, #tpu.memory_space<smem>>
    memref.store %25, %arg3[%c0_10, %c1] : memref<1x3xf32, #tpu.memory_space<smem>>
    %27 = vector.shape_cast %1 : vector<16x128xf32> to vector<2x8x128xf32>
    %cst_11 = arith.constant dense<0.000000e+00> : vector<8x128xf32>
    %28 = vector.multi_reduction <add>, %27, %cst_11 [0] : vector<2x8x128xf32> to vector<8x128xf32>
    %29 = vector.shape_cast %28 : vector<8x128xf32> to vector<1x8x128xf32>
    %cst_12 = arith.constant dense<0.000000e+00> : vector<1xf32>
    %30 = vector.multi_reduction <add>, %29, %cst_12 [1, 2] : vector<1x8x128xf32> to vector<1xf32>
    %31 = vector.shape_cast %30 : vector<1xf32> to vector<1x1x1xf32>
    %32 = vector.extract %31[0, 0, 0] : f32 from vector<1x1x1xf32>
    %c0_13 = arith.constant 0 : index
    %c2 = arith.constant 2 : index
    %33 = memref.load %arg3[%c0_13, %c2] : memref<1x3xf32, #tpu.memory_space<smem>>
    memref.store %32, %arg3[%c0_13, %c2] : memref<1x3xf32, #tpu.memory_space<smem>>
    return
  }
  func.func @transform_0(%arg0: i32) -> (i32, i32) {
    %c0_i32 = arith.constant 0 : i32
    %c0_i32_0 = arith.constant 0 : i32
    return %arg0, %c0_i32 : i32, i32
  }
  func.func @transform_1(%arg0: i32) -> (i32, i32) {
    %c0_i32 = arith.constant 0 : i32
    %c0_i32_0 = arith.constant 0 : i32
    return %arg0, %c0_i32 : i32, i32
  }
  func.func @transform_2(%arg0: i32) -> (i32, i32) {
    %c0_i32 = arith.constant 0 : i32
    %c0_i32_0 = arith.constant 0 : i32
    return %arg0, %c0_i32 : i32, i32
  }
}

</mosaic_0001>

<llo_original>
// kernel: soft_custom_dice_loss.1
$region0: #{soft_custom_dice_loss.1}
  #allocation0 [shape = 'u32[]', space=smem, size = 0x4, offset = 0x4, fixed_abs, tag = 'smem constant byte address 0x4 - core index']
  #allocation1 [shape = 'u32[144,128]{1,0:T(1,128)}', space=vmem, size = 0x12000, scoped, tag = 'internal scratch']
  %s0 = inlined_call_operand.vmem [shape: f32[16,128], index: 0, kind: input, shape index: {}]
  %s1 = inlined_call_operand.vmem [shape: f32[16,128], index: 1, kind: input, shape index: {}]
  %s2 = inlined_call_operand.vmem [shape: f32[1,3], index: 2, kind: output, shape index: {}]
  %s3 = sld [smem:[#allocation0]]
  $region18: #{soft_custom_dice_loss.1} parent=0
    _
  %s5 = ssub.s32 1, %s3
  %s6 = scalar_select 0, %s5, %s3
  $region1: #{soft_custom_dice_loss.1} parent=0
    #allocation2 [shape = 'u8[512]{0}', space=smem, size = 0x200, scoped, tag = 'output window, operand 0, single buffered']
    #allocation3 [shape = 's32[1]{0}', space=sflag, size = 0x4, scoped, tag = 'scoped memory for soft_custom_dice_loss.1']
    %7 = vsyncpa [#allocation3], 0
    // Predicated region
    $region2: #{soft_custom_dice_loss.1} parent=1 // pred_check
      _
    $region3: #{soft_custom_dice_loss.1} parent=1 // pred_check_branch
      %9 = sbr.rel (0) target = $region5
    $region4: #{soft_custom_dice_loss.1} parent=1 // pred_region
      _
    $region5: #{soft_custom_dice_loss.1} parent=1 // pred_fallthru
      _
    // Predicated region
    $region6: #{soft_custom_dice_loss.1} parent=1 // pred_check
      _
    $region7: #{soft_custom_dice_loss.1} parent=1 // pred_check_branch
      %11 = sbr.rel (0) target = $region9
    $region8: #{soft_custom_dice_loss.1} parent=1 // pred_region
      _
    $region9: #{soft_custom_dice_loss.1} parent=1 // pred_fallthru
      _
    %v12 = vld [vmem:[%s0] sm:$0xff]
    %v13 = vld [vmem:[%s0 + $0x8] sm:$0xff]
    %v14 = vld [vmem:[%s1] sm:$0xff]
    %v15 = vld [vmem:[%s1 + $0x8] sm:$0xff]
    %v16 = vxor.u32 %v12, 2147483648
    %v17 = vxor.u32 %v13, 2147483648
    %v18 = vmul.f32 %v16, 1.442695
    %v19 = vpow.pop %v18
    %v20 = vmul.f32 %v17, 1.442695
    %v21 = vpow.pop %v20
    %v22 = vadd.f32 %v19, 1.0
    %v23 = vadd.f32 %v21, 1.0
    %v24 = vrcp.pop %v22
    %v25 = vmul.f32 1.0, %v24
    %v26 = vrcp.pop %v23
    %v27 = vmul.f32 1.0, %v26
    %v28 = vxor.u32 %v25, 2147483648
    %v29 = vxor.u32 %v27, 2147483648
    %v30 = vmul.f32 %v28, 1.442695
    %v31 = vpow.pop %v30
    %v32 = vmul.f32 %v29, 1.442695
    %v33 = vpow.pop %v32
    %v34 = vadd.f32 %v31, 1.0
    %v35 = vadd.f32 %v33, 1.0
    %v36 = vrcp.pop %v34
    %v37 = vmul.f32 1.0, %v36
    %v38 = vrcp.pop %v35
    %v39 = vmul.f32 1.0, %v38
    %v40 = vmul.f32 %v37, %v14
    %v41 = vmul.f32 %v39, %v15
    %v42 = vadd.f32 %v40, %v41
    %43 = vadd.xlane.f32.xlu0 %v42
    %v44 = vpop.xlane.xlu0 %43
    %v45 = vrot.slane %v44, 4
    %v46 = vadd.f32 %v44, %v45
    %v47 = vrot.slane %v46, 2
    %v48 = vadd.f32 %v46, %v47
    %v49 = vrot.slane %v48, 1
    %v50 = vadd.f32 %v48, %v49
    %s51 = vtos %v50
    %s52 = scalar_lea.smem [#allocation2], 0
    %53 = sst [smem:[%s52]] %s51
    %v54 = vadd.f32 %v37, %v39
    %55 = vadd.xlane.f32.xlu0 %v54
    %v56 = vpop.xlane.xlu0 %55
    %v57 = vrot.slane %v56, 4
    %v58 = vadd.f32 %v56, %v57
    %v59 = vrot.slane %v58, 2
    %v60 = vadd.f32 %v58, %v59
    %v61 = vrot.slane %v60, 1
    %v62 = vadd.f32 %v60, %v61
    %s63 = vtos %v62
    %s64 = scalar_lea.smem [#allocation2], 1
    %65 = sst [smem:[%s64]] %s63
    %v66 = vadd.f32 %v14, %v15
    %67 = vadd.xlane.f32.xlu0 %v66
    %v68 = vpop.xlane.xlu0 %67
    %v69 = vrot.slane %v68, 4
    %v70 = vadd.f32 %v68, %v69
    %v71 = vrot.slane %v70, 2
    %v72 = vadd.f32 %v70, %v71
    %v73 = vrot.slane %v72, 1
    %v74 = vadd.f32 %v72, %v73
    %s75 = vtos %v74
    %s76 = scalar_lea.smem [#allocation2], 2
    %77 = sst [smem:[%s76]] %s75
    // Predicated region
    $region10: #{soft_custom_dice_loss.1} parent=1 // pred_check
      _
    $region11: #{soft_custom_dice_loss.1} parent=1 // pred_check_branch
      %79 = sbr.rel (0) target = $region13
    $region12: #{soft_custom_dice_loss.1} parent=1 // pred_region
      %s81 = ssub.s32 16, 16
      %82 = vsyncadd [#allocation3], %s81
      %s84 = sshll.u32 %s2, 4
      %s85 = int_to_ptr.vmem [resolvable:$true] %s84
      %87 = dma.smem_to_vmem [#allocation2], 16, %s85, [#allocation3]
    $region13: #{soft_custom_dice_loss.1} parent=1 // pred_fallthru
      _
    // Predicated region
    $region14: #{soft_custom_dice_loss.1} parent=1 // pred_check
      _
    $region15: #{soft_custom_dice_loss.1} parent=1 // pred_check_branch
      %89 = sbr.rel (0) target = $region17
    $region16: #{soft_custom_dice_loss.1} parent=1 // pred_region
      %90 = dma.done [#allocation3], 16
    $region17: #{soft_custom_dice_loss.1} parent=1 // pred_fallthru
      _
    %91 = sfence
    %92 = vsyncpa [#allocation3], 1

</llo_original>
